<compile_context>
chip_gen: v7x
topology: tpu7x:2x2x1
jax: 0.10.0
libtpu: 0.0.40
codegen_flags: <defaults>
</compile_context>

<pallas_src>
import math

import jax
import jax.numpy as jnp
import numpy as np
from jax.experimental import pallas as pl
from jax.experimental.pallas import tpu as pltpu

HIDDEN_DIM = 32          # ConvexNN hidden_dim for the demo (kernel works for any H)
LANES_OUT = 128          # output points per row (multiple of 128 -> unmasked stores)
LANES_IN = 2 * LANES_OUT # interleaved (I1, I2) lanes per row
MAX_BLOCK_ROWS = 1024    # <= ~1.5 MiB per grid step (v5e / v7x friendly)
TARGET_GRID_STEPS = 8    # give v7x's two TensorCores work whenever possible


def _round_up(a: int, b: int) -> int:
    return -(-a // b) * b


def _cdiv(a: int, b: int) -> int:
    return -(-a // b)


def _convexnn_kernel(x_ref, cvec_ref, d_ref, o_ref):
    """out[r, l] = v1 * x[r, 2l] + v2 * x[r, 2l+1]  (m = r*LANES_OUT + l, natural order).

    x_ref    : VMEM (bm, LANES_IN)        naturally interleaved (I1, I2) stream
    cvec_ref : VMEM (1, LANES_IN) f32     per-lane pattern [v1, v2, v1, v2, ...] (resident)
    d_ref    : VMEM (LANES_IN, LANES_OUT) bf16 0/1 pair-sum matrix D[2l,l]=D[2l+1,l]=1 (resident)
    o_ref    : VMEM (bm, LANES_OUT)
    """
    # Apply the (constant-folded) ConvexNN coefficients on the VPU in exact f32.
    z = x_ref[...].astype(jnp.float32) * cvec_ref[...]
    # Exact hi/lo bf16 split: each pair-sum matmul below is a single bf16 MXU pass with
    # exactly-representable operands, so the f32-accurate result does not depend on how
    # the compiler handles f32-matmul precision.
    z_hi = z.astype(jnp.bfloat16)
    z_lo = (z - z_hi.astype(jnp.float32)).astype(jnp.bfloat16)
    d = d_ref[...]
    acc = jnp.dot(z_hi, d, preferred_element_type=jnp.float32)
    acc = acc + jnp.dot(z_lo, d, preferred_element_type=jnp.float32)
    o_ref[...] = acc.astype(o_ref.dtype)


def convexnn_forward(I, raw_w1, raw_w2, raw_w3):
    """Pallas TPU implementation of ConvexNN.forward.

    I      : [..., 2] invariants (I1, I2), any leading shape, f32 or bf16.
    raw_w* : raw weights; ReLU is applied to the weights (as in the PyTorch module).
    Returns: [..., 1] with the same leading shape and dtype as I.
    """
    *lead, two = I.shape
    assert two == 2, "ConvexNN expects the invariant pair (I1, I2) on the last axis"
    M = math.prod(lead) if lead else 1

    # ---- Hoisted constant weight path: v = relu(W3) @ relu(W2) @ relu(W1)  (1, 2) ----
    # NOTE: valid only because the network is linear in I (ReLU acts on the weights).
    hp = jax.lax.Precision.HIGHEST
    W1 = jax.nn.relu(raw_w1.astype(jnp.float32))          # (H, 2)
    W2 = jax.nn.relu(raw_w2.astype(jnp.float32))          # (H, H)
    W3 = jax.nn.relu(raw_w3.astype(jnp.float32))          # (1, H)
    v = jnp.dot(W3, jnp.dot(W2, W1, precision=hp), precision=hp)      # (1, 2) = [v1, v2]

    # Constant per-lane coefficient pattern and 0/1 pair-sum matrix (both tiny, resident).
    cvec = jnp.tile(v.reshape(2), LANES_OUT).reshape(1, LANES_IN)                  # f32
    dmat = jnp.repeat(jnp.eye(LANES_OUT, dtype=jnp.bfloat16), 2, axis=0)           # (LANES_IN, LANES_OUT)

    # ---- Row / block geometry over the interleaved flat stream -----------------------
    R = _cdiv(M, LANES_OUT)                                        # rows of LANES_OUT points
    bm = min(MAX_BLOCK_ROWS, max(8, _round_up(_cdiv(R, TARGET_GRID_STEPS), 8)))
    Rp = _round_up(R, bm)
    grid = (Rp // bm,)

    flat = I.reshape(-1)                                           # free reshape (row-major)
    padded_len = 2 * Rp * LANES_OUT
    if padded_len != 2 * M:
        # Only emitted for non-tile-aligned sizes (no-op pads are simplified away).
        flat = jnp.pad(flat, (0, padded_len - 2 * M))
    x2d = flat.reshape(Rp, LANES_IN)

    out2d = pl.pallas_call(
        _convexnn_kernel,
        out_shape=jax.ShapeDtypeStruct((Rp, LANES_OUT), I.dtype),
        grid_spec=pltpu.PrefetchScalarGridSpec(
            num_scalar_prefetch=0,
            grid=grid,
            in_specs=[
                # Streaming interleaved input tile: full, unmasked vector loads.
                pl.BlockSpec((bm, LANES_IN), lambda i: (i, 0)),
                # Constant block index -> fetched once, stays resident across the grid.
                pl.BlockSpec((1, LANES_IN), lambda i: (0, 0)),
                pl.BlockSpec((LANES_IN, LANES_OUT), lambda i: (0, 0)),
            ],
            # Lane-dense output tile in natural (row-major) order: no inverse transpose.
            out_specs=pl.BlockSpec((bm, LANES_OUT), lambda i: (i, 0)),
        ),
        compiler_params=pltpu.CompilerParams(dimension_semantics=("parallel",)),
    )(x2d, cvec, dmat)

    out_flat = out2d.reshape(-1)
    if padded_len != 2 * M:
        out_flat = out_flat[:M]        # touches only the (half-size) output when padded
    return out_flat.reshape(*lead, 1)


# ---------------------------------------------------------------------------------------
# Pure-JAX reference mirroring the PyTorch module exactly.
def _convexnn_ref(I, raw_w1, raw_w2, raw_w3):
    hp = jax.lax.Precision.HIGHEST
    W1 = jax.nn.relu(raw_w1)
    W2 = jax.nn.relu(raw_w2)
    W3 = jax.nn.relu(raw_w3)
    x = jnp.matmul(I, W1.T, precision=hp)
    x = jnp.matmul(x, W2.T, precision=hp)
    return jnp.matmul(x, W3.T, precision=hp)


if __name__ == "__main__":
    key = jax.random.PRNGKey(0)
    kw1, kw2, kw3, ki1, ki2 = jax.random.split(key, 5)

    scale = 1e-6  # matches ConvexNN.__init__: torch.rand(...) * 1e-6
    raw_w1 = jax.random.uniform(kw1, (HIDDEN_DIM, 2), dtype=jnp.float32) * scale
    raw_w2 = jax.random.uniform(kw2, (HIDDEN_DIM, HIDDEN_DIM), dtype=jnp.float32) * scale
    raw_w3 = jax.random.uniform(kw3, (1, HIDDEN_DIM), dtype=jnp.float32) * scale

    def _check(I):
        out = jax.block_until_ready(convexnn_forward(I, raw_w1, raw_w2, raw_w3))
        ref = np.asarray(_convexnn_ref(I, raw_w1, raw_w2, raw_w3))
        assert out.shape == ref.shape and out.dtype == I.dtype
        tol = 1e-4 * float(np.max(np.abs(ref))) + 1e-30
        np.testing.assert_allclose(np.asarray(out), ref, rtol=1e-4, atol=tol)

    # Tile-aligned case: no pad is emitted and the grid has 2 steps.
    I_a = jax.random.normal(ki1, (2, 1024, 2), dtype=jnp.float32)
    _check(I_a)

    # Awkward size: exercises the (only-when-needed) tail-pad path.
    I_b = jax.random.normal(ki2, (3, 37, 2), dtype=jnp.float32)
    _check(I_b)

    print("KERNEL_OK")
</pallas_src>

<mosaic_0001>
module attributes {stable_mosaic.version = 11 : i64} {
  func.func @_convexnn_kernel(%arg0: i32, %arg1: memref<8x256xf32, #tpu.memory_space<vmem>>, %arg2: memref<1x256xf32, #tpu.memory_space<vmem>>, %arg3: memref<256x128xbf16, #tpu.memory_space<vmem>>, %arg4: memref<8x128xf32, #tpu.memory_space<vmem>>) attributes {dimension_semantics = [#tpu.dimension_semantics<parallel>], iteration_bounds = array<i64: 2>, scalar_prefetch = 0 : i64, scratch_operands = 0 : i64, tpu.core_type = #tpu.core_type<tc>, window_params = [{transform_indices = @transform_0, window_bounds = array<i64: 8, 256>}, {pipeline_mode = #tpu.pipeline_mode<synchronous>, transform_indices = @transform_1, window_bounds = array<i64: 1, 256>}, {pipeline_mode = #tpu.pipeline_mode<synchronous>, transform_indices = @transform_2, window_bounds = array<i64: 256, 128>}, {transform_indices = @transform_3, window_bounds = array<i64: 8, 128>}]} {
    %c0 = arith.constant 0 : index
    %c0_0 = arith.constant 0 : index
    %0 = vector.load %arg1[%c0, %c0_0] : memref<8x256xf32, #tpu.memory_space<vmem>>, vector<8x256xf32>
    %c0_1 = arith.constant 0 : index
    %c0_2 = arith.constant 0 : index
    %1 = vector.load %arg2[%c0_1, %c0_2] : memref<1x256xf32, #tpu.memory_space<vmem>>, vector<1x256xf32>
    %2 = vector.broadcast %1 : vector<1x256xf32> to vector<8x256xf32>
    %3 = arith.mulf %0, %2 : vector<8x256xf32>
    %4 = arith.truncf %3 : vector<8x256xf32> to vector<8x256xbf16>
    %5 = arith.extf %4 : vector<8x256xbf16> to vector<8x256xf32>
    %6 = arith.subf %3, %5 : vector<8x256xf32>
    %7 = arith.truncf %6 : vector<8x256xf32> to vector<8x256xbf16>
    %c0_3 = arith.constant 0 : index
    %c0_4 = arith.constant 0 : index
    %8 = vector.load %arg3[%c0_3, %c0_4] : memref<256x128xbf16, #tpu.memory_space<vmem>>, vector<256x128xbf16>
    %cst = arith.constant dense<0.000000e+00> : vector<8x128xf32>
    %9 = tpu.matmul %4, %8, %cst {dimension_numbers = #tpu.dot_dimension_numbers<[1], [0], [0], [1], [0, 0, 1, 1], [], []>} : vector<8x256xbf16>, vector<256x128xbf16>, vector<8x128xf32> -> vector<8x128xf32>
    %cst_5 = arith.constant dense<0.000000e+00> : vector<8x128xf32>
    %10 = tpu.matmul %7, %8, %cst_5 {dimension_numbers = #tpu.dot_dimension_numbers<[1], [0], [0], [1], [0, 0, 1, 1], [], []>} : vector<8x256xbf16>, vector<256x128xbf16>, vector<8x128xf32> -> vector<8x128xf32>
    %11 = arith.addf %9, %10 : vector<8x128xf32>
    %c0_6 = arith.constant 0 : index
    %c0_7 = arith.constant 0 : index
    %12 = vector.load %arg4[%c0_6, %c0_7] : memref<8x128xf32, #tpu.memory_space<vmem>>, vector<8x128xf32>
    tpu.vector_store %arg4[%c0_6, %c0_7], %11 {strides = array<i32>} : memref<8x128xf32, #tpu.memory_space<vmem>>, vector<8x128xf32>,
    return
  }
  func.func @transform_0(%arg0: i32) -> (i32, i32) {
    %c0_i32 = arith.constant 0 : i32
    %c0_i32_0 = arith.constant 0 : i32
    return %arg0, %c0_i32 : i32, i32
  }
  func.func @transform_1(%arg0: i32) -> (i32, i32) {
    %c0_i32 = arith.constant 0 : i32
    %c0_i32_0 = arith.constant 0 : i32
    %c0_i32_1 = arith.constant 0 : i32
    return %c0_i32, %c0_i32_0 : i32, i32
  }
  func.func @transform_2(%arg0: i32) -> (i32, i32) {
    %c0_i32 = arith.constant 0 : i32
    %c0_i32_0 = arith.constant 0 : i32
    %c0_i32_1 = arith.constant 0 : i32
    return %c0_i32, %c0_i32_0 : i32, i32
  }
  func.func @transform_3(%arg0: i32) -> (i32, i32) {
    %c0_i32 = arith.constant 0 : i32
    %c0_i32_0 = arith.constant 0 : i32
    return %arg0, %c0_i32 : i32, i32
  }
}

</mosaic_0001>

<llo_original>
// kernel: tpu_custom_call.1
$region0: #{tpu_custom_call.1}
  #allocation0 [shape = 'u32[]', space=smem, size = 0x4, offset = 0x4, fixed_abs, tag = 'smem constant byte address 0x4 - core index']
  #allocation1 [shape = 'u32[144,128]{1,0:T(1,128)}', space=vmem, size = 0x12000, scoped, tag = 'internal scratch']
  %s0 = inlined_call_operand.hbm [shape: f32[16,256], index: 0, kind: input, shape index: {}]
  %s1 = inlined_call_operand.vmem [shape: f32[1,256], index: 1, kind: input, shape index: {}]
  %s2 = inlined_call_operand.hbm [shape: bf16[256,128], index: 2, kind: input, shape index: {}]
  %s3 = inlined_call_operand.hbm [shape: f32[16,128], index: 3, kind: output, shape index: {}]
  %s4 = sld [smem:[#allocation0]]
  $region53: #{tpu_custom_call.1} parent=0
    _
  %s6 = ssub.s32 1, %s4
  %s7 = scalar_select 0, %s6, %s4
  $region1: #{tpu_custom_call.1} parent=0
    #allocation2 [shape = 'u8[16384]{0}', space=vmem, size = 0x4000, scoped, tag = 'input window, operand 0']
    #allocation3 [shape = 's32[2]{0}', space=sflag, size = 0x8, scoped, tag = 'scoped memory for tpu_custom_call.1']
    #allocation4 [shape = 's32[2]{0}', space=sflag, size = 0x8, scoped, tag = 'scoped memory for tpu_custom_call.1']
    #allocation5 [shape = 'u8[65536]{0}', space=vmem, size = 0x10000, scoped, tag = 'input window, operand 2, single buffered']
    #allocation6 [shape = 's32[1]{0}', space=sflag, size = 0x4, scoped, tag = 'scoped memory for tpu_custom_call.1']
    #allocation7 [shape = 'u8[8192]{0}', space=vmem, size = 0x2000, scoped, tag = 'output window, operand 0']
    %8 = vsyncpa [#allocation3], 0
    %s9 = scalar_lea.sflag [#allocation3], 1
    %10 = vsyncpa %s9, 0
    %11 = vsyncpa [#allocation6], 0
    %12 = vsyncpa [#allocation4], 0
    %s13 = scalar_lea.sflag [#allocation4], 1
    %14 = vsyncpa %s13, 0
    loop: start=0, step=1, limit=4
    $region2: #{tpu_custom_call.1} parent=1 // loop_pre_header
      _
    $region3: #{tpu_custom_call.1} parent=1 // loop_header
      %s16 = sphi 0, %s20
      %p17 = scmp.ge.s32.totalorder %s16, 4
      %s26 = sphi 0, %s28
      %s29 = sphi 0, %s26
      %s30 = sphi 0, %s29
      %s46 = sphi 0, %s30
      %s50 = sphi 0, %s50
      %s52 = sphi 0, %s50
      %s53 = sphi 0, %s52
      %s67 = sphi 0, %s53
      %s71 = sphi 0, %s71
      %s73 = sphi 0, %s71
      %s74 = sphi 0, %s73
      %s88 = sphi 0, %s74
      %s94 = sphi 0, %s96
      %s97 = sphi 0, %s94
      %s98 = sphi 0, %s97
      %s114 = sphi 0, %s98
    $region4: #{tpu_custom_call.1} parent=1 // loop_header_branch
      %19 = sbr.rel (%p17) target = $region8
    $region5: #{tpu_custom_call.1} parent=1 // loop_body
      %s21 = ssub.s32 %s16, 1
      %s22 = ssub.s32 %s16, 2
      %s23 = sadd.s32 %s16, 1
      %s24 = ssub.s32 %s16, %s23
      %p25 = scmp.eq.s32.totalorder %s24, 0
      %s27 = sadd.s32 %s26, 1
      %s28 = scalar_select %p25, %s26, %s27
      %p31 = pneg %p25
      %p32 = scmp.eq.s32.totalorder %s16, 1
      %p33 = por %p31, %p32
      %p34 = scmp.ne.s32.totalorder %s26, %s29
      %p35 = scmp.eq.s32.totalorder %s16, 0
      %p36 = por %p34, %p35
      %p37 = scmp.ne.s32.totalorder %s26, %s29
      %p38 = scmp.eq.s32.totalorder %s21, 1
      %p39 = por %p37, %p38
      %p40 = scmp.ne.s32.totalorder %s29, %s30
      %p41 = scmp.eq.s32.totalorder %s21, 0
      %p42 = por %p40, %p41
      %p43 = scmp.ne.s32.totalorder %s29, %s30
      %p44 = scmp.eq.s32.totalorder %s22, 1
      %p45 = por %p43, %p44
      %p47 = scmp.ne.s32.totalorder %s30, %s46
      %p48 = scmp.eq.s32.totalorder %s22, 0
      %p49 = por %p47, %p48
      %s51 = sadd.s32 %s50, 1
      %p54 = scmp.eq.s32.totalorder %s16, 1
      %p55 = scmp.ne.s32.totalorder %s50, %s52
      %p56 = scmp.eq.s32.totalorder %s16, 0
      %p57 = por %p55, %p56
      %p58 = scmp.ne.s32.totalorder %s50, %s52
      %p59 = scmp.eq.s32.totalorder %s21, 1
      %p60 = por %p58, %p59
      %p61 = scmp.ne.s32.totalorder %s52, %s53
      %p62 = scmp.eq.s32.totalorder %s21, 0
      %p63 = por %p61, %p62
      %p64 = scmp.ne.s32.totalorder %s52, %s53
      %p65 = scmp.eq.s32.totalorder %s22, 1
      %p66 = por %p64, %p65
      %p68 = scmp.ne.s32.totalorder %s53, %s67
      %p69 = scmp.eq.s32.totalorder %s22, 0
      %p70 = por %p68, %p69
      %s72 = sadd.s32 %s71, 1
      %p75 = scmp.eq.s32.totalorder %s16, 1
      %p76 = scmp.ne.s32.totalorder %s71, %s73
      %p77 = scmp.eq.s32.totalorder %s16, 0
      %p78 = por %p76, %p77
      %p79 = scmp.ne.s32.totalorder %s71, %s73
      %p80 = scmp.eq.s32.totalorder %s21, 1
      %p81 = por %p79, %p80
      %p82 = scmp.ne.s32.totalorder %s73, %s74
      %p83 = scmp.eq.s32.totalorder %s21, 0
      %p84 = por %p82, %p83
      %p85 = scmp.ne.s32.totalorder %s73, %s74
      %p86 = scmp.eq.s32.totalorder %s22, 1
      %p87 = por %p85, %p86
      %p89 = scmp.ne.s32.totalorder %s74, %s88
      %p90 = scmp.eq.s32.totalorder %s22, 0
      %p91 = por %p89, %p90
      %s92 = ssub.s32 %s16, %s23
      %p93 = scmp.eq.s32.totalorder %s92, 0
      %s95 = sadd.s32 %s94, 1
      %s96 = scalar_select %p93, %s94, %s95
      %p99 = pneg %p93
      %p100 = scmp.eq.s32.totalorder %s16, 1
      %p101 = por %p99, %p100
      %p102 = scmp.ne.s32.totalorder %s94, %s97
      %p103 = scmp.eq.s32.totalorder %s16, 0
      %p104 = por %p102, %p103
      %p105 = scmp.ne.s32.totalorder %s94, %s97
      %p106 = scmp.eq.s32.totalorder %s21, 1
      %p107 = por %p105, %p106
      %p108 = scmp.ne.s32.totalorder %s97, %s98
      %p109 = scmp.eq.s32.totalorder %s21, 0
      %p110 = por %p108, %p109
      %p111 = scmp.ne.s32.totalorder %s97, %s98
      %p112 = scmp.eq.s32.totalorder %s22, 1
      %p113 = por %p111, %p112
      %p115 = scmp.ne.s32.totalorder %s98, %s114
      %p116 = scmp.eq.s32.totalorder %s22, 0
      %p117 = por %p115, %p116
      %p118 = scmp.le.s32.totalorder 1, %s16
      %p119 = scmp.lt.s32.totalorder %s16, 3
      %p120 = pnand %p118, %p119
      %p121 = pneg %p120
      // Predicated region
      $region9: #{tpu_custom_call.1} parent=5 // pred_check
        _
      $region10: #{tpu_custom_call.1} parent=5 // pred_check_branch
        %123 = sbr.rel (%p120) target = $region12
      $region11: #{tpu_custom_call.1} parent=5 // pred_region
        %s124 = ssub.s32 %s16, 1
        // Predicated region
        $region13: #{tpu_custom_call.1} parent=11 // pred_check
          %p125 = pneg %p63
        $region14: #{tpu_custom_call.1} parent=11 // pred_check_branch
          %127 = sbr.rel (%p125) target = $region16
        $region15: #{tpu_custom_call.1} parent=11 // pred_region
          _
        $region16: #{tpu_custom_call.1} parent=11 // pred_fallthru
          _
        // Predicated region
        $region17: #{tpu_custom_call.1} parent=11 // pred_check
          %p128 = pneg %p84
        $region18: #{tpu_custom_call.1} parent=11 // pred_check_branch
          %130 = sbr.rel (%p128) target = $region20
        $region19: #{tpu_custom_call.1} parent=11 // pred_region
          %s132 = ssub.s32 2048, 2048
          %133 = vsyncadd [#allocation6], %s132
          %s134 = sshll.u32 [#allocation5], 4
          %s135 = int_to_ptr.vmem [resolvable:$true] %s134
          %140 = dma.hbm_to_vmem [thread:$0]  %s2, 2048, %s135, [#allocation6], 64, 64, 4
        $region20: #{tpu_custom_call.1} parent=11 // pred_fallthru
          _
      $region12: #{tpu_custom_call.1} parent=5 // pred_fallthru
        _
      %p141 = scmp.lt.s32.totalorder %s16, 2
      // Predicated region
      $region21: #{tpu_custom_call.1} parent=5 // pred_check
        %p142 = pneg %p141
      $region22: #{tpu_custom_call.1} parent=5 // pred_check_branch
        %144 = sbr.rel (%p142) target = $region24
      $region23: #{tpu_custom_call.1} parent=5 // pred_region
        // Predicated region
        $region25: #{tpu_custom_call.1} parent=23 // pred_check
          %p145 = pneg %p36
        $region26: #{tpu_custom_call.1} parent=23 // pred_check_branch
          %147 = sbr.rel (%p145) target = $region28
        $region27: #{tpu_custom_call.1} parent=23 // pred_region
          %s148 = sand.u32 %s26, 1
          %s149 = scalar_lea.sflag [#allocation3], %s148
          %s150 = sand.u32 %s26, 1
          %s151 = smul.addr %s150, 16
          %s152 = scalar_lea.vmem [#allocation2], %s151
          %s154 = ssub.s32 256, 256
          %155 = vsyncadd %s149, %s154
          %s156 = smul.addr %s16, 2
          %s157 = smul.addr %s156, 128
          %s158 = scalar_lea.hbm %s0, %s157
          %s160 = sshll.u32 %s152, 4
          %s161 = int_to_ptr.vmem [resolvable:$true] %s160
          %163 = dma.hbm_to_vmem [thread:$0]  %s158, 256, %s161, %s149
        $region28: #{tpu_custom_call.1} parent=23 // pred_fallthru
          _
      $region24: #{tpu_custom_call.1} parent=5 // pred_fallthru
        _
      %p164 = scmp.le.s32.totalorder 1, %s16
      %p165 = scmp.lt.s32.totalorder %s16, 3
      %p166 = pnand %p164, %p165
      %p167 = pneg %p166
      // Predicated region
      $region29: #{tpu_custom_call.1} parent=5 // pred_check
        _
      $region30: #{tpu_custom_call.1} parent=5 // pred_check_branch
        %169 = sbr.rel (%p166) target = $region32
      $region31: #{tpu_custom_call.1} parent=5 // pred_region
        %s170 = ssub.s32 %s16, 1
        %s171 = sand.u32 %s29, 1
        %s172 = scalar_lea.sflag [#allocation3], %s171
        %s173 = sand.u32 %s29, 1
        %s174 = smul.addr %s173, 16
        %s175 = scalar_lea.vmem [#allocation2], %s174
        // Predicated region
        $region33: #{tpu_custom_call.1} parent=31 // pred_check
          %p176 = pneg %p42
        $region34: #{tpu_custom_call.1} parent=31 // pred_check_branch
          %178 = sbr.rel (%p176) target = $region36
        $region35: #{tpu_custom_call.1} parent=31 // pred_region
          %179 = dma.done %s172, 256
        $region36: #{tpu_custom_call.1} parent=31 // pred_fallthru
          _
        // Predicated region
        $region37: #{tpu_custom_call.1} parent=31 // pred_check
          %p180 = pneg %p84
        $region38: #{tpu_custom_call.1} parent=31 // pred_check_branch
          %182 = sbr.rel (%p180) target = $region40
        $region39: #{tpu_custom_call.1} parent=31 // pred_region
          %183 = dma.done [#allocation6], 2048
        $region40: #{tpu_custom_call.1} parent=31 // pred_fallthru
          _
        %s184 = sand.u32 %s29, 1
        %s185 = scalar_lea.sflag [#allocation3], %s184
        %s186 = sand.u32 %s29, 1
        %s187 = smul.addr %s186, 16
        %s188 = scalar_lea.vmem [#allocation2], %s187
        %p189 = pneg %p42
        %p190 = pneg %p39
        %p191 = pneg %p63
        %p192 = pneg %p60
        %p193 = pneg %p84
        %p194 = pneg %p81
        %p195 = pneg %p110
        %p196 = pneg %p107
        %s197 = sand.u32 %s97, 1
        %s198 = scalar_lea.sflag [#allocation4], %s197
        %s199 = sand.u32 %s97, 1
        %s200 = smul.addr %s199, 8
        %s201 = scalar_lea.vmem [#allocation7], %s200
        %v203 = vld [vmem:[%s175] sm:$0xff]
        %v204 = vld [vmem:[%s175 + $0x8] sm:$0xff]
        %v205 = vld [vmem:[%s1] sm:$0x3]
        %v207 = vlaneseq
        %v208 = vshrl.u32 %v207, 7
        %v209 = vsub.s32 0, %v208
        %v210 = vrot.slane %v205, %v209
        %v211 = vlaneseq
        %v212 = vshrl.u32 %v211, 7
        %v213 = vsub.s32 1, %v212
        %v214 = vrot.slane %v205, %v213
        %v217 = vmul.f32 %v203, %v210
        %v218 = vmul.f32 %v204, %v214
        %v219 = vpack.c.bf16 %v217, %v217
        %v220 = vpack.c.bf16 %v218, %v218
        %v221 = vunpack.c.l.bf16 %v219
        %v222 = vunpack.c.l.bf16 %v220
        %v223 = vsub.f32 %v217, %v221
        %v224 = vsub.f32 %v218, %v222
        %v225 = vpack.c.bf16 %v223, %v223
        %v226 = vpack.c.bf16 %v224, %v224
        %v227 = vld [vmem:[#allocation5] sm:$0xf]
        %v228 = vld [vmem:[#allocation5 + $0x4] sm:$0xf]
        %v229 = vld [vmem:[#allocation5 + $0x8] sm:$0xf]
        %v230 = vld [vmem:[#allocation5 + $0xc] sm:$0xf]
        %v231 = vld [vmem:[#allocation5 + $0x10] sm:$0xf]
        %v232 = vld [vmem:[#allocation5 + $0x14] sm:$0xf]
        %v233 = vld [vmem:[#allocation5 + $0x18] sm:$0xf]
        %v234 = vld [vmem:[#allocation5 + $0x1c] sm:$0xf]
        %v235 = vld [vmem:[#allocation5 + $0x20] sm:$0xf]
        %v236 = vld [vmem:[#allocation5 + $0x24] sm:$0xf]
        %v237 = vld [vmem:[#allocation5 + $0x28] sm:$0xf]
        %v238 = vld [vmem:[#allocation5 + $0x2c] sm:$0xf]
        %v239 = vld [vmem:[#allocation5 + $0x30] sm:$0xf]
        %v240 = vld [vmem:[#allocation5 + $0x34] sm:$0xf]
        %v241 = vld [vmem:[#allocation5 + $0x38] sm:$0xf]
        %v242 = vld [vmem:[#allocation5 + $0x3c] sm:$0xf]
        %v243 = vld [vmem:[#allocation5 + $0x40] sm:$0xf]
        %v244 = vld [vmem:[#allocation5 + $0x44] sm:$0xf]
        %v245 = vld [vmem:[#allocation5 + $0x48] sm:$0xf]
        %v246 = vld [vmem:[#allocation5 + $0x4c] sm:$0xf]
        %v247 = vld [vmem:[#allocation5 + $0x50] sm:$0xf]
        %v248 = vld [vmem:[#allocation5 + $0x54] sm:$0xf]
        %v249 = vld [vmem:[#allocation5 + $0x58] sm:$0xf]
        %v250 = vld [vmem:[#allocation5 + $0x5c] sm:$0xf]
        %v251 = vld [vmem:[#allocation5 + $0x60] sm:$0xf]
        %v252 = vld [vmem:[#allocation5 + $0x64] sm:$0xf]
        %v253 = vld [vmem:[#allocation5 + $0x68] sm:$0xf]
        %v254 = vld [vmem:[#allocation5 + $0x6c] sm:$0xf]
        %v255 = vld [vmem:[#allocation5 + $0x70] sm:$0xf]
        %v256 = vld [vmem:[#allocation5 + $0x74] sm:$0xf]
        %v257 = vld [vmem:[#allocation5 + $0x78] sm:$0xf]
        %v258 = vld [vmem:[#allocation5 + $0x7c] sm:$0xf]
        %v291 = vunpack.c.l.b16 %v227
        %v292 = vunpack.c.l.b16 %v228
        %v293 = vunpack.c.l.b16 %v229
        %v294 = vunpack.c.l.b16 %v230
        %v295 = vunpack.c.l.b16 %v231
        %v296 = vunpack.c.l.b16 %v232
        %v297 = vunpack.c.l.b16 %v233
        %v298 = vunpack.c.l.b16 %v234
        %v299 = vunpack.c.l.b16 %v235
        %v300 = vunpack.c.l.b16 %v236
        %v301 = vunpack.c.l.b16 %v237
        %v302 = vunpack.c.l.b16 %v238
        %v303 = vunpack.c.l.b16 %v239
        %v304 = vunpack.c.l.b16 %v240
        %v305 = vunpack.c.l.b16 %v241
        %v306 = vunpack.c.l.b16 %v242
        %v307 = vunpack.c.l.b16 %v243
        %v308 = vunpack.c.l.b16 %v244
        %v309 = vunpack.c.l.b16 %v245
        %v310 = vunpack.c.l.b16 %v246
        %v311 = vunpack.c.l.b16 %v247
        %v312 = vunpack.c.l.b16 %v248
        %v313 = vunpack.c.l.b16 %v249
        %v314 = vunpack.c.l.b16 %v250
        %v315 = vunpack.c.l.b16 %v251
        %v316 = vunpack.c.l.b16 %v252
        %v317 = vunpack.c.l.b16 %v253
        %v318 = vunpack.c.l.b16 %v254
        %v319 = vunpack.c.l.b16 %v255
        %v320 = vunpack.c.l.b16 %v256
        %v321 = vunpack.c.l.b16 %v257
        %v322 = vunpack.c.l.b16 %v258
        %v323 = vpack.c.b16 %v292, %v291
        %v324 = vpack.c.b16 %v294, %v293
        %v325 = vpack.c.b16 %v296, %v295
        %v326 = vpack.c.b16 %v298, %v297
        %v327 = vpack.c.b16 %v300, %v299
        %v328 = vpack.c.b16 %v302, %v301
        %v329 = vpack.c.b16 %v304, %v303
        %v330 = vpack.c.b16 %v306, %v305
        %v331 = vpack.c.b16 %v308, %v307
        %v332 = vpack.c.b16 %v310, %v309
        %v333 = vpack.c.b16 %v312, %v311
        %v334 = vpack.c.b16 %v314, %v313
        %v335 = vpack.c.b16 %v316, %v315
        %v336 = vpack.c.b16 %v318, %v317
        %v337 = vpack.c.b16 %v320, %v319
        %v338 = vpack.c.b16 %v322, %v321
        %355 = vmatprep.subr.bf16.mxu0 0
        %356 = vmatpush1.bf16.msra.mxu0 %v323
        %357 = vmatprep.subr.bf16.mxu0 0
        %358 = vmatpush1.bf16.msra.mxu0 %v324
        %359 = vmatprep.subr.bf16.mxu0 0
        %360 = vmatpush1.bf16.msra.mxu0 %v325
        %361 = vmatprep.subr.bf16.mxu0 0
        %362 = vmatpush1.bf16.msra.mxu0 %v326
        %363 = vmatprep.subr.bf16.mxu0 0
        %364 = vmatpush1.bf16.msra.mxu0 %v327
        %365 = vmatprep.subr.bf16.mxu0 0
        %366 = vmatpush1.bf16.msra.mxu0 %v328
        %367 = vmatprep.subr.bf16.mxu0 0
        %368 = vmatpush1.bf16.msra.mxu0 %v329
        %369 = vmatprep.subr.bf16.mxu0 0
        %370 = vmatpush1.bf16.msra.mxu0 %v330
        %371 = vmatprep.subr.bf16.mxu0 0
        %372 = vmatpush1.bf16.msra.mxu0 %v331
        %373 = vmatprep.subr.bf16.mxu0 0
        %374 = vmatpush1.bf16.msra.mxu0 %v332
        %375 = vmatprep.subr.bf16.mxu0 0
        %376 = vmatpush1.bf16.msra.mxu0 %v333
        %377 = vmatprep.subr.bf16.mxu0 0
        %378 = vmatpush1.bf16.msra.mxu0 %v334
        %379 = vmatprep.subr.bf16.mxu0 0
        %380 = vmatpush1.bf16.msra.mxu0 %v335
        %381 = vmatprep.subr.bf16.mxu0 0
        %382 = vmatpush1.bf16.msra.mxu0 %v336
        %383 = vmatprep.subr.bf16.mxu0 0
        %384 = vmatpush1.bf16.msra.mxu0 %v337
        %385 = vmatprep.subr.bf16.mxu0 0
        %386 = vmatpush1.bf16.msra.mxu0 %v338
        %387 = vmatprep.mubr.bf16.mxu0 %v226
        %388 = vmatmul.mubr.bf16.gmra.mrb[0].mxu0 %v225
        %v389 = vpop.f32.mrb[0].mxu0
        %v390 = vadd.f32 0.0, %v389
        %v391 = vpop.f32.mrb[0].mxu0
        %v392 = vpop.f32.mrb[0].mxu0
        %v393 = vpop.f32.mrb[0].mxu0
        %394 = vdwg.mxu0
        %395 = vmatprep.subr.bf16.mxu0 0
        %396 = vmatpush1.bf16.msra.mxu0 %v323
        %397 = vmatprep.subr.bf16.mxu0 0
        %398 = vmatpush1.bf16.msra.mxu0 %v324
        %399 = vmatprep.subr.bf16.mxu0 0
        %400 = vmatpush1.bf16.msra.mxu0 %v325
        %401 = vmatprep.subr.bf16.mxu0 0
        %402 = vmatpush1.bf16.msra.mxu0 %v326
        %403 = vmatprep.subr.bf16.mxu0 0
        %404 = vmatpush1.bf16.msra.mxu0 %v327
        %405 = vmatprep.subr.bf16.mxu0 0
        %406 = vmatpush1.bf16.msra.mxu0 %v328
        %407 = vmatprep.subr.bf16.mxu0 0
        %408 = vmatpush1.bf16.msra.mxu0 %v329
        %409 = vmatprep.subr.bf16.mxu0 0
        %410 = vmatpush1.bf16.msra.mxu0 %v330
        %411 = vmatprep.subr.bf16.mxu0 0
        %412 = vmatpush1.bf16.msra.mxu0 %v331
        %413 = vmatprep.subr.bf16.mxu0 0
        %414 = vmatpush1.bf16.msra.mxu0 %v332
        %415 = vmatprep.subr.bf16.mxu0 0
        %416 = vmatpush1.bf16.msra.mxu0 %v333
        %417 = vmatprep.subr.bf16.mxu0 0
        %418 = vmatpush1.bf16.msra.mxu0 %v334
        %419 = vmatprep.subr.bf16.mxu0 0
        %420 = vmatpush1.bf16.msra.mxu0 %v335
        %421 = vmatprep.subr.bf16.mxu0 0
        %422 = vmatpush1.bf16.msra.mxu0 %v336
        %423 = vmatprep.subr.bf16.mxu0 0
        %424 = vmatpush1.bf16.msra.mxu0 %v337
        %425 = vmatprep.subr.bf16.mxu0 0
        %426 = vmatpush1.bf16.msra.mxu0 %v338
        %427 = vmatprep.mubr.bf16.mxu0 %v220
        %428 = vmatmul.mubr.bf16.gmra.mrb[0].mxu0 %v219
        %v429 = vpop.f32.mrb[0].mxu0
        %v430 = vadd.f32 %v390, %v429
        %v431 = vpop.f32.mrb[0].mxu0
        %v432 = vpop.f32.mrb[0].mxu0
        %v433 = vpop.f32.mrb[0].mxu0
        %434 = vdwg.mxu0
        %435 = vst [vmem:[%s201] sm:$0xff] %v430
        %s436 = sand.u32 %s97, 1
        %s437 = scalar_lea.sflag [#allocation4], %s436
        %s438 = sand.u32 %s97, 1
        %s439 = smul.addr %s438, 8
        %s440 = scalar_lea.vmem [#allocation7], %s439
        // Predicated region
        $region41: #{tpu_custom_call.1} parent=31 // pred_check
          %p441 = pneg %p107
        $region42: #{tpu_custom_call.1} parent=31 // pred_check_branch
          %443 = sbr.rel (%p441) target = $region44
        $region43: #{tpu_custom_call.1} parent=31 // pred_region
          %s445 = ssub.s32 128, 128
          %446 = vsyncadd %s437, %s445
          %s447 = smul.addr %s21, 128
          %s448 = scalar_lea.hbm %s3, %s447
          %s450 = sshll.u32 %s440, 4
          %s451 = int_to_ptr.vmem [resolvable:$true] %s450
          %453 = dma.vmem_to_hbm [thread:$0]  %s451, 128, %s448, %s437
        $region44: #{tpu_custom_call.1} parent=31 // pred_fallthru
          _
      $region32: #{tpu_custom_call.1} parent=5 // pred_fallthru
        _
      %p454 = scmp.le.s32.totalorder 2, %s16
      // Predicated region
      $region45: #{tpu_custom_call.1} parent=5 // pred_check
        %p455 = pneg %p454
      $region46: #{tpu_custom_call.1} parent=5 // pred_check_branch
        %457 = sbr.rel (%p455) target = $region48
      $region47: #{tpu_custom_call.1} parent=5 // pred_region
        %s458 = ssub.s32 %s16, 2
        // Predicated region
        $region49: #{tpu_custom_call.1} parent=47 // pred_check
          %p459 = pneg %p113
        $region50: #{tpu_custom_call.1} parent=47 // pred_check_branch
          %461 = sbr.rel (%p459) target = $region52
        $region51: #{tpu_custom_call.1} parent=47 // pred_region
          %s462 = sand.u32 %s98, 1
          %s463 = scalar_lea.sflag [#allocation4], %s462
          %s464 = sand.u32 %s98, 1
          %s465 = smul.addr %s464, 8
          %s466 = scalar_lea.vmem [#allocation7], %s465
          %467 = dma.done %s463, 128
        $region52: #{tpu_custom_call.1} parent=47 // pred_fallthru
          _
      $region48: #{tpu_custom_call.1} parent=5 // pred_fallthru
        _
    $region6: #{tpu_custom_call.1} parent=1 // loop_footer
      %s20 = sadd.s32 1, %s16
    $region7: #{tpu_custom_call.1} parent=1 // loop_footer_branch
      %15 = sbr.rel target = $region3
    $region8: #{tpu_custom_call.1} parent=1 // loop_exit
      _
    %468 = vsyncpa [#allocation3], 1
    %s469 = scalar_lea.sflag [#allocation3], 1
    %470 = vsyncpa %s469, 1
    %471 = vsyncpa [#allocation6], 1
    %472 = vsyncpa [#allocation4], 1
    %s473 = scalar_lea.sflag [#allocation4], 1
    %474 = vsyncpa %s473, 1

</llo_original>
